<compile_context>
chip_gen: v7x
topology: tpu7x:2x2x1
jax: 0.10.0
libtpu: 0.0.40
codegen_flags: <defaults>
</compile_context>

<pallas_src>
import jax
import jax.numpy as jnp
import numpy as np
from jax.experimental import pallas as pl
from jax.experimental.pallas import tpu as pltpu


def _vmem_capacity_bytes():
    """Physical VMEM of the local TPU; conservative fallback (v7x = 64 MiB)."""
    try:
        return int(pltpu.get_tpu_info().vmem_capacity_bytes)
    except Exception:
        return 64 * 1024 * 1024


def _choose_row_tile(H, W, C, logit_bytes, label_bytes, budget_bytes, row_align=16):
    """Largest TH (multiple of row_align dividing H) whose strip fits the budget.

    row_align=16 satisfies both f32 (8) and bf16 (16) sublane tiling; a block
    equal to full H is always legal and is the last-resort fallback.
    """
    # Per-row VMEM footprint of one grid step:
    #   double-buffered inputs : 2 * (C*logit_bytes + label_bytes) * W
    #   f32 in-kernel temps    : ~6 C-channel maps (x, e, p, iota, mask, where)
    #   plus a few (TH, W) f32 row maps (best / sumexp / lse / inv)
    per_row = W * (2 * (C * logit_bytes + label_bytes) + 6 * C * 4 + 4 * 4)
    th_cap = max(row_align, budget_bytes // max(per_row, 1))

    best = None
    for th in range(row_align, H + 1, row_align):
        if H % th == 0 and th <= th_cap:
            best = th
    if best is not None:
        return best
    for th in range(row_align, H + 1, row_align):   # nothing fits budget: smallest aligned strip
        if H % th == 0:
            return th
    # H has no multiple-of-row_align divisor: full rows (always a legal block).
    return H


def _stats_kernel(pred_ref, tgt_ref, ce_ref, cnt_ref, inter_ref, psum_ref):
    # pred_ref: (1, C, TH, W) logits (f32 or bf16)   tgt_ref: (1, 1, TH, W) int32
    # outputs : (1, 1, C, W) f32 accumulators, resident across the row-strip axis.
    s = pl.program_id(2)
    _, C, TH, W = pred_ref.shape

    @pl.when(s == 0)
    def _init():
        ce_ref[...] = jnp.zeros_like(ce_ref)
        cnt_ref[...] = jnp.zeros_like(cnt_ref)
        inter_ref[...] = jnp.zeros_like(inter_ref)
        psum_ref[...] = jnp.zeros_like(psum_ref)

    x = pred_ref[0].astype(jnp.float32)                 # (C, TH, W), upcast in-kernel
    tgt = tgt_ref[0, 0].astype(jnp.int32)               # (TH, W)

    # Stable softmax / log-sum-exp over the class axis: a single exp per
    # class-pixel, reused for both the probabilities and the sum.
    best = jnp.max(x, axis=0)                           # (TH, W)
    e = jnp.exp(x - best)                               # (C, TH, W)
    sumexp = jnp.sum(e, axis=0)                         # (TH, W)
    inv = pl.reciprocal(sumexp, approx=True)            # EUP vrcp ...
    inv = inv * (2.0 - sumexp * inv)                    # ... + one Newton step (VALU)
    p = e * inv                                         # softmax probabilities
    lse = best + jnp.log(sumexp)                        # (TH, W)

    cls = jax.lax.broadcasted_iota(jnp.int32, (C, TH, W), 0)
    is_c = tgt == cls                                   # one-hot mask, broadcast over C
    zero = jnp.float32(0.0)

    ce_ref[0, 0] = ce_ref[0, 0] + jnp.sum(jnp.where(is_c, lse - x, zero), axis=1)
    cnt_ref[0, 0] = cnt_ref[0, 0] + jnp.sum(jnp.where(is_c, 1.0, zero), axis=1)
    inter_ref[0, 0] = inter_ref[0, 0] + jnp.sum(jnp.where(is_c, p, zero), axis=1)
    psum_ref[0, 0] = psum_ref[0, 0] + jnp.sum(p, axis=1)


def make_tversky_ce_loss(num_classes, alpha, beta, phi, cel, ftl, eps=1e-7):
    if cel + ftl != 1:
        raise ValueError('Cross Entropy weight and Tversky weight should sum to 1')
    if num_classes == 1:
        # TODO(synk): num_classes == 1 sigmoid branch of tversky_loss not implemented.
        raise NotImplementedError('multi-class (num_classes > 1) path only')

    vmem_cap = _vmem_capacity_bytes()
    vmem_limit = int(min(vmem_cap * 3 // 4, 96 * 1024 * 1024))   # above v5e/v6e defaults
    tile_budget = vmem_limit // 3                                # headroom for temps/outputs

    @jax.jit
    def loss_fn(pred, target):
        # Keep logits in their incoming dtype (bf16 ingest halves HBM reads on
        # mem-bound v5e/v6e); the kernel upcasts per-tile to f32 for the math.
        if not jnp.issubdtype(pred.dtype, jnp.floating):
            pred = pred.astype(jnp.float32)
        target = target.astype(jnp.int32)
        N, C, H, W = pred.shape
        assert C == num_classes

        TH = _choose_row_tile(H, W, C, pred.dtype.itemsize, 4, tile_budget)
        num_strips = H // TH
        # Megacore (v7x): guarantee a parallel axis of extent >= 2 even for N == 1
        # by splitting the row-strip axis into P parallel panels.
        P = 2 if (N == 1 and num_strips % 2 == 0) else 1
        S = num_strips // P
        grid = (N, P, S)

        acc_spec = pl.BlockSpec((1, 1, C, W), lambda n, p, s: (n, p, 0, 0))
        out_shape = tuple(jax.ShapeDtypeStruct((N, P, C, W), jnp.float32)
                          for _ in range(4))

        ce_p, cnt_p, int_p, ps_p = pl.pallas_call(
            _stats_kernel,
            out_shape=out_shape,
            grid_spec=pltpu.PrefetchScalarGridSpec(
                num_scalar_prefetch=0,
                grid=grid,
                in_specs=[
                    pl.BlockSpec((1, C, TH, W), lambda n, p, s: (n, 0, p * S + s, 0)),
                    pl.BlockSpec((1, 1, TH, W), lambda n, p, s: (n, 0, p * S + s, 0)),
                ],
                out_specs=[acc_spec] * 4,
            ),
            compiler_params=pltpu.CompilerParams(
                dimension_semantics=("parallel", "parallel", "arbitrary"),
                vmem_limit_bytes=vmem_limit),
        )(pred, target)

        # ----- tiny O(C*W) combine in plain JAX -----
        ce_cw = jnp.sum(ce_p, axis=(0, 1))      # (C, W)
        cnt_cw = jnp.sum(cnt_p, axis=(0, 1))    # (C, W) == one-hot sums over (N, H)
        inter_cw = jnp.sum(int_p, axis=(0, 1))  # (C, W)
        psum_cw = jnp.sum(ps_p, axis=(0, 1))    # (C, W)

        # Module's weights(): 1 - per-class pixel frequency.
        counts = jnp.sum(cnt_cw, axis=1)                        # (C,)
        w = 1.0 - counts / jnp.sum(counts)

        # Weighted CrossEntropyLoss with 'mean' reduction.
        ce_per_class = jnp.sum(ce_cw, axis=1)                   # (C,)
        ce_seg = jnp.sum(w * ce_per_class) / jnp.sum(w * counts)

        # Tversky focal loss, reductions over dims (0, 2) -> (C, W) map.
        fps = psum_cw - inter_cw
        fns = cnt_cw - inter_cw
        denom = inter_cw + alpha * fps + beta * fns
        tversky = jnp.mean(inter_cw / (denom + eps))
        tv = (1.0 - tversky) ** phi

        return cel * ce_seg + ftl * tv

    return loss_fn


def _reference(pred, target, num_classes, alpha, beta, phi, cel, ftl, eps=1e-7):
    """Pure-JAX replica of the PyTorch forward (multi-class branch)."""
    pred = pred.astype(jnp.float32)
    tgt = target[:, 0].astype(jnp.int32)                        # (N, H, W)
    C = pred.shape[1]
    onehot_nhwc = jax.nn.one_hot(tgt, C, dtype=jnp.float32)     # (N, H, W, C)
    counts = jnp.sum(onehot_nhwc, axis=(0, 1, 2))               # (C,)
    w = 1.0 - counts / jnp.sum(counts)

    logp = jax.nn.log_softmax(pred, axis=1)
    ce_px = -jnp.take_along_axis(logp, tgt[:, None], axis=1)[:, 0]   # (N, H, W)
    w_px = w[tgt]
    ce_seg = jnp.sum(w_px * ce_px) / jnp.sum(w_px)

    probas = jax.nn.softmax(pred, axis=1)                       # (N, C, H, W)
    t1h = jnp.transpose(onehot_nhwc, (0, 3, 1, 2))              # (N, C, H, W)
    dims = (0, 2)   # faithful to the PyTorch code (target squeezed -> 3 dims)
    inter = jnp.sum(probas * t1h, axis=dims)
    fps = jnp.sum(probas * (1.0 - t1h), axis=dims)
    fns = jnp.sum((1.0 - probas) * t1h, axis=dims)
    tversky = jnp.mean(inter / (inter + alpha * fps + beta * fns + eps))
    tv = (1.0 - tversky) ** phi
    return cel * ce_seg + ftl * tv


if __name__ == "__main__":
    key = jax.random.PRNGKey(0)
    k1, k2 = jax.random.split(key)
    N, C, H, W = 2, 4, 16, 16
    alpha, beta, phi, cel, ftl = 0.3, 0.7, 2.0, 0.5, 0.5

    pred = jax.random.normal(k1, (N, C, H, W), jnp.float32)
    target = jax.random.randint(k2, (N, 1, H, W), 0, C, dtype=jnp.int32)

    loss_fn = make_tversky_ce_loss(C, alpha, beta, phi, cel, ftl)
    out = loss_fn(pred, target)
    out = jax.block_until_ready(out)

    ref = _reference(pred, target, C, alpha, beta, phi, cel, ftl)
    np.testing.assert_allclose(np.asarray(out), np.asarray(ref),
                               rtol=1e-4, atol=1e-5)
    print("KERNEL_OK")
</pallas_src>

<mosaic_0001>
module attributes {stable_mosaic.version = 11 : i64} {
  func.func @_stats_kernel(%arg0: i32, %arg1: i32, %arg2: i32, %arg3: memref<1x4x16x16xf32, #tpu.memory_space<vmem>>, %arg4: memref<1x1x16x16xi32, #tpu.memory_space<vmem>>, %arg5: memref<1x1x4x16xf32, #tpu.memory_space<vmem>>, %arg6: memref<1x1x4x16xf32, #tpu.memory_space<vmem>>, %arg7: memref<1x1x4x16xf32, #tpu.memory_space<vmem>>, %arg8: memref<1x1x4x16xf32, #tpu.memory_space<vmem>>) attributes {dimension_semantics = [#tpu.dimension_semantics<parallel>, #tpu.dimension_semantics<parallel>, #tpu.dimension_semantics<arbitrary>], iteration_bounds = array<i64: 2, 1, 1>, scalar_prefetch = 0 : i64, scratch_operands = 0 : i64, tpu.core_type = #tpu.core_type<tc>, window_params = [{transform_indices = @transform_0, window_bounds = array<i64: 1, 4, 16, 16>}, {transform_indices = @transform_1, window_bounds = array<i64: 1, 1, 16, 16>}, {transform_indices = @transform_2, window_bounds = array<i64: 1, 1, 4, 16>}, {transform_indices = @transform_3, window_bounds = array<i64: 1, 1, 4, 16>}, {transform_indices = @transform_4, window_bounds = array<i64: 1, 1, 4, 16>}, {transform_indices = @transform_5, window_bounds = array<i64: 1, 1, 4, 16>}]} {
    %c0_i32 = arith.constant 0 : i32
    %0 = arith.cmpi eq, %arg2, %c0_i32 : i32
    %1 = arith.extui %0 : i1 to i32
    %c0_i32_0 = arith.constant 0 : i32
    %2 = arith.cmpi ne, %1, %c0_i32_0 : i32
    scf.if %2 {
      %cst_50 = arith.constant 0.000000e+00 : f32
      %65 = vector.broadcast %cst_50 : f32 to vector<1x1x4x16xf32>
      %c0_51 = arith.constant 0 : index
      %c0_52 = arith.constant 0 : index
      %c0_53 = arith.constant 0 : index
      %c0_54 = arith.constant 0 : index
      %66 = vector.load %arg5[%c0_51, %c0_52, %c0_53, %c0_54] : memref<1x1x4x16xf32, #tpu.memory_space<vmem>>, vector<1x1x4x16xf32>
      tpu.vector_store %arg5[%c0_51, %c0_52, %c0_53, %c0_54], %65 {strides = array<i32>} : memref<1x1x4x16xf32, #tpu.memory_space<vmem>>, vector<1x1x4x16xf32>,
      %cst_55 = arith.constant 0.000000e+00 : f32
      %67 = vector.broadcast %cst_55 : f32 to vector<1x1x4x16xf32>
      %c0_56 = arith.constant 0 : index
      %c0_57 = arith.constant 0 : index
      %c0_58 = arith.constant 0 : index
      %c0_59 = arith.constant 0 : index
      %68 = vector.load %arg6[%c0_56, %c0_57, %c0_58, %c0_59] : memref<1x1x4x16xf32, #tpu.memory_space<vmem>>, vector<1x1x4x16xf32>
      tpu.vector_store %arg6[%c0_56, %c0_57, %c0_58, %c0_59], %67 {strides = array<i32>} : memref<1x1x4x16xf32, #tpu.memory_space<vmem>>, vector<1x1x4x16xf32>,
      %cst_60 = arith.constant 0.000000e+00 : f32
      %69 = vector.broadcast %cst_60 : f32 to vector<1x1x4x16xf32>
      %c0_61 = arith.constant 0 : index
      %c0_62 = arith.constant 0 : index
      %c0_63 = arith.constant 0 : index
      %c0_64 = arith.constant 0 : index
      %70 = vector.load %arg7[%c0_61, %c0_62, %c0_63, %c0_64] : memref<1x1x4x16xf32, #tpu.memory_space<vmem>>, vector<1x1x4x16xf32>
      tpu.vector_store %arg7[%c0_61, %c0_62, %c0_63, %c0_64], %69 {strides = array<i32>} : memref<1x1x4x16xf32, #tpu.memory_space<vmem>>, vector<1x1x4x16xf32>,
      %cst_65 = arith.constant 0.000000e+00 : f32
      %71 = vector.broadcast %cst_65 : f32 to vector<1x1x4x16xf32>
      %c0_66 = arith.constant 0 : index
      %c0_67 = arith.constant 0 : index
      %c0_68 = arith.constant 0 : index
      %c0_69 = arith.constant 0 : index
      %72 = vector.load %arg8[%c0_66, %c0_67, %c0_68, %c0_69] : memref<1x1x4x16xf32, #tpu.memory_space<vmem>>, vector<1x1x4x16xf32>
      tpu.vector_store %arg8[%c0_66, %c0_67, %c0_68, %c0_69], %71 {strides = array<i32>} : memref<1x1x4x16xf32, #tpu.memory_space<vmem>>, vector<1x1x4x16xf32>,
    } else {
    }
    %c0 = arith.constant 0 : index
    %c0_1 = arith.constant 0 : index
    %c0_2 = arith.constant 0 : index
    %c0_3 = arith.constant 0 : index
    %3 = vector.load %arg3[%c0, %c0_1, %c0_2, %c0_3] : memref<1x4x16x16xf32, #tpu.memory_space<vmem>>, vector<1x4x16x16xf32>
    %4 = vector.shape_cast %3 : vector<1x4x16x16xf32> to vector<4x16x16xf32>
    %c0_4 = arith.constant 0 : index
    %c0_5 = arith.constant 0 : index
    %c0_6 = arith.constant 0 : index
    %c0_7 = arith.constant 0 : index
    %5 = vector.load %arg4[%c0_4, %c0_5, %c0_6, %c0_7] : memref<1x1x16x16xi32, #tpu.memory_space<vmem>>, vector<1x1x16x16xi32>
    %6 = vector.shape_cast %5 : vector<1x1x16x16xi32> to vector<16x16xi32>
    %cst = arith.constant dense<0xFF800000> : vector<16x16xf32>
    %7 = vector.multi_reduction <maximumf>, %4, %cst [0] : vector<4x16x16xf32> to vector<16x16xf32>
    %8 = vector.shape_cast %7 : vector<16x16xf32> to vector<1x16x16xf32>
    %9 = vector.broadcast %8 : vector<1x16x16xf32> to vector<4x16x16xf32>
    %10 = arith.subf %4, %9 : vector<4x16x16xf32>
    %11 = math.exp %10 : vector<4x16x16xf32>
    %cst_8 = arith.constant dense<0.000000e+00> : vector<16x16xf32>
    %12 = vector.multi_reduction <add>, %11, %cst_8 [0] : vector<4x16x16xf32> to vector<16x16xf32>
    %13 = tpu.reciprocal %12 {approx = true} : vector<16x16xf32> -> vector<16x16xf32>
    %14 = arith.mulf %12, %13 : vector<16x16xf32>
    %cst_9 = arith.constant 2.000000e+00 : f32
    %15 = vector.broadcast %cst_9 : f32 to vector<16x16xf32>
    %16 = arith.subf %15, %14 : vector<16x16xf32>
    %17 = arith.mulf %13, %16 : vector<16x16xf32>
    %18 = vector.shape_cast %17 : vector<16x16xf32> to vector<1x16x16xf32>
    %19 = vector.broadcast %18 : vector<1x16x16xf32> to vector<4x16x16xf32>
    %20 = arith.mulf %11, %19 : vector<4x16x16xf32>
    %21 = math.log %12 : vector<16x16xf32>
    %22 = arith.addf %7, %21 : vector<16x16xf32>
    %23 = tpu.iota {dimensions = array<i32: 0>} : vector<4x16x16xi32>
    %24 = vector.shape_cast %6 : vector<16x16xi32> to vector<1x16x16xi32>
    %25 = vector.broadcast %24 : vector<1x16x16xi32> to vector<4x16x16xi32>
    %26 = arith.cmpi eq, %25, %23 : vector<4x16x16xi32>
    %c0_10 = arith.constant 0 : index
    %c0_11 = arith.constant 0 : index
    %c0_12 = arith.constant 0 : index
    %c0_13 = arith.constant 0 : index
    %27 = vector.load %arg5[%c0_10, %c0_11, %c0_12, %c0_13] : memref<1x1x4x16xf32, #tpu.memory_space<vmem>>, vector<1x1x4x16xf32>
    %28 = vector.shape_cast %27 : vector<1x1x4x16xf32> to vector<4x16xf32>
    %29 = vector.shape_cast %22 : vector<16x16xf32> to vector<1x16x16xf32>
    %30 = vector.broadcast %29 : vector<1x16x16xf32> to vector<4x16x16xf32>
    %31 = arith.subf %30, %4 : vector<4x16x16xf32>
    %cst_14 = arith.constant 0.000000e+00 : f32
    %32 = vector.broadcast %cst_14 : f32 to vector<4x16x16xf32>
    %33 = arith.select %26, %31, %32 : vector<4x16x16xi1>, vector<4x16x16xf32>
    %cst_15 = arith.constant dense<0.000000e+00> : vector<4x16xf32>
    %34 = vector.multi_reduction <add>, %33, %cst_15 [1] : vector<4x16x16xf32> to vector<4x16xf32>
    %35 = arith.addf %28, %34 : vector<4x16xf32>
    %c0_16 = arith.constant 0 : index
    %c0_17 = arith.constant 0 : index
    %c0_18 = arith.constant 0 : index
    %c0_19 = arith.constant 0 : index
    %36 = vector.load %arg5[%c0_16, %c0_17, %c0_18, %c0_19] : memref<1x1x4x16xf32, #tpu.memory_space<vmem>>, vector<1x1x4x16xf32>
    %37 = vector.shape_cast %36 : vector<1x1x4x16xf32> to vector<4x16xf32>
    %38 = vector.shape_cast %35 : vector<4x16xf32> to vector<1x1x4x16xf32>
    tpu.vector_store %arg5[%c0_16, %c0_17, %c0_18, %c0_19], %38 {strides = array<i32>} : memref<1x1x4x16xf32, #tpu.memory_space<vmem>>, vector<1x1x4x16xf32>,
    %c0_20 = arith.constant 0 : index
    %c0_21 = arith.constant 0 : index
    %c0_22 = arith.constant 0 : index
    %c0_23 = arith.constant 0 : index
    %39 = vector.load %arg6[%c0_20, %c0_21, %c0_22, %c0_23] : memref<1x1x4x16xf32, #tpu.memory_space<vmem>>, vector<1x1x4x16xf32>
    %40 = vector.shape_cast %39 : vector<1x1x4x16xf32> to vector<4x16xf32>
    %cst_24 = arith.constant 1.000000e+00 : f32
    %cst_25 = arith.constant 0.000000e+00 : f32
    %41 = vector.broadcast %cst_24 : f32 to vector<4x16x16xf32>
    %42 = vector.broadcast %cst_25 : f32 to vector<4x16x16xf32>
    %43 = arith.select %26, %41, %42 : vector<4x16x16xi1>, vector<4x16x16xf32>
    %cst_26 = arith.constant dense<0.000000e+00> : vector<4x16xf32>
    %44 = vector.multi_reduction <add>, %43, %cst_26 [1] : vector<4x16x16xf32> to vector<4x16xf32>
    %45 = arith.addf %40, %44 : vector<4x16xf32>
    %c0_27 = arith.constant 0 : index
    %c0_28 = arith.constant 0 : index
    %c0_29 = arith.constant 0 : index
    %c0_30 = arith.constant 0 : index
    %46 = vector.load %arg6[%c0_27, %c0_28, %c0_29, %c0_30] : memref<1x1x4x16xf32, #tpu.memory_space<vmem>>, vector<1x1x4x16xf32>
    %47 = vector.shape_cast %46 : vector<1x1x4x16xf32> to vector<4x16xf32>
    %48 = vector.shape_cast %45 : vector<4x16xf32> to vector<1x1x4x16xf32>
    tpu.vector_store %arg6[%c0_27, %c0_28, %c0_29, %c0_30], %48 {strides = array<i32>} : memref<1x1x4x16xf32, #tpu.memory_space<vmem>>, vector<1x1x4x16xf32>,
    %c0_31 = arith.constant 0 : index
    %c0_32 = arith.constant 0 : index
    %c0_33 = arith.constant 0 : index
    %c0_34 = arith.constant 0 : index
    %49 = vector.load %arg7[%c0_31, %c0_32, %c0_33, %c0_34] : memref<1x1x4x16xf32, #tpu.memory_space<vmem>>, vector<1x1x4x16xf32>
    %50 = vector.shape_cast %49 : vector<1x1x4x16xf32> to vector<4x16xf32>
    %cst_35 = arith.constant 0.000000e+00 : f32
    %51 = vector.broadcast %cst_35 : f32 to vector<4x16x16xf32>
    %52 = arith.select %26, %20, %51 : vector<4x16x16xi1>, vector<4x16x16xf32>
    %cst_36 = arith.constant dense<0.000000e+00> : vector<4x16xf32>
    %53 = vector.multi_reduction <add>, %52, %cst_36 [1] : vector<4x16x16xf32> to vector<4x16xf32>
    %54 = arith.addf %50, %53 : vector<4x16xf32>
    %c0_37 = arith.constant 0 : index
    %c0_38 = arith.constant 0 : index
    %c0_39 = arith.constant 0 : index
    %c0_40 = arith.constant 0 : index
    %55 = vector.load %arg7[%c0_37, %c0_38, %c0_39, %c0_40] : memref<1x1x4x16xf32, #tpu.memory_space<vmem>>, vector<1x1x4x16xf32>
    %56 = vector.shape_cast %55 : vector<1x1x4x16xf32> to vector<4x16xf32>
    %57 = vector.shape_cast %54 : vector<4x16xf32> to vector<1x1x4x16xf32>
    tpu.vector_store %arg7[%c0_37, %c0_38, %c0_39, %c0_40], %57 {strides = array<i32>} : memref<1x1x4x16xf32, #tpu.memory_space<vmem>>, vector<1x1x4x16xf32>,
    %c0_41 = arith.constant 0 : index
    %c0_42 = arith.constant 0 : index
    %c0_43 = arith.constant 0 : index
    %c0_44 = arith.constant 0 : index
    %58 = vector.load %arg8[%c0_41, %c0_42, %c0_43, %c0_44] : memref<1x1x4x16xf32, #tpu.memory_space<vmem>>, vector<1x1x4x16xf32>
    %59 = vector.shape_cast %58 : vector<1x1x4x16xf32> to vector<4x16xf32>
    %cst_45 = arith.constant dense<0.000000e+00> : vector<4x16xf32>
    %60 = vector.multi_reduction <add>, %20, %cst_45 [1] : vector<4x16x16xf32> to vector<4x16xf32>
    %61 = arith.addf %59, %60 : vector<4x16xf32>
    %c0_46 = arith.constant 0 : index
    %c0_47 = arith.constant 0 : index
    %c0_48 = arith.constant 0 : index
    %c0_49 = arith.constant 0 : index
    %62 = vector.load %arg8[%c0_46, %c0_47, %c0_48, %c0_49] : memref<1x1x4x16xf32, #tpu.memory_space<vmem>>, vector<1x1x4x16xf32>
    %63 = vector.shape_cast %62 : vector<1x1x4x16xf32> to vector<4x16xf32>
    %64 = vector.shape_cast %61 : vector<4x16xf32> to vector<1x1x4x16xf32>
    tpu.vector_store %arg8[%c0_46, %c0_47, %c0_48, %c0_49], %64 {strides = array<i32>} : memref<1x1x4x16xf32, #tpu.memory_space<vmem>>, vector<1x1x4x16xf32>,
    return
  }
  func.func @transform_0(%arg0: i32, %arg1: i32, %arg2: i32) -> (i32, i32, i32, i32) {
    %c1_i32 = arith.constant 1 : i32
    %0 = arith.muli %arg1, %c1_i32 : i32
    %1 = arith.addi %0, %arg2 : i32
    %c0_i32 = arith.constant 0 : i32
    %c0_i32_0 = arith.constant 0 : i32
    %c0_i32_1 = arith.constant 0 : i32
    return %arg0, %c0_i32, %1, %c0_i32_0 : i32, i32, i32, i32
  }
  func.func @transform_1(%arg0: i32, %arg1: i32, %arg2: i32) -> (i32, i32, i32, i32) {
    %c1_i32 = arith.constant 1 : i32
    %0 = arith.muli %arg1, %c1_i32 : i32
    %1 = arith.addi %0, %arg2 : i32
    %c0_i32 = arith.constant 0 : i32
    %c0_i32_0 = arith.constant 0 : i32
    %c0_i32_1 = arith.constant 0 : i32
    return %arg0, %c0_i32, %1, %c0_i32_0 : i32, i32, i32, i32
  }
  func.func @transform_2(%arg0: i32, %arg1: i32, %arg2: i32) -> (i32, i32, i32, i32) {
    %c0_i32 = arith.constant 0 : i32
    %c0_i32_0 = arith.constant 0 : i32
    %c0_i32_1 = arith.constant 0 : i32
    return %arg0, %arg1, %c0_i32, %c0_i32_0 : i32, i32, i32, i32
  }
  func.func @transform_3(%arg0: i32, %arg1: i32, %arg2: i32) -> (i32, i32, i32, i32) {
    %c0_i32 = arith.constant 0 : i32
    %c0_i32_0 = arith.constant 0 : i32
    %c0_i32_1 = arith.constant 0 : i32
    return %arg0, %arg1, %c0_i32, %c0_i32_0 : i32, i32, i32, i32
  }
  func.func @transform_4(%arg0: i32, %arg1: i32, %arg2: i32) -> (i32, i32, i32, i32) {
    %c0_i32 = arith.constant 0 : i32
    %c0_i32_0 = arith.constant 0 : i32
    %c0_i32_1 = arith.constant 0 : i32
    return %arg0, %arg1, %c0_i32, %c0_i32_0 : i32, i32, i32, i32
  }
  func.func @transform_5(%arg0: i32, %arg1: i32, %arg2: i32) -> (i32, i32, i32, i32) {
    %c0_i32 = arith.constant 0 : i32
    %c0_i32_0 = arith.constant 0 : i32
    %c0_i32_1 = arith.constant 0 : i32
    return %arg0, %arg1, %c0_i32, %c0_i32_0 : i32, i32, i32, i32
  }
}

</mosaic_0001>

<llo_original>
// kernel: loss_fn.1
$region0: #{loss_fn.1}
  #allocation0 [shape = 'u32[]', space=smem, size = 0x4, offset = 0x4, fixed_abs, tag = 'smem constant byte address 0x4 - core index']
  #allocation1 [shape = 'u32[144,128]{1,0:T(1,128)}', space=vmem, size = 0x12000, scoped, tag = 'internal scratch']
  %s0 = inlined_call_operand.hbm [shape: f32[2,4,16,16], index: 0, kind: input, shape index: {}]
  %s1 = inlined_call_operand.hbm [shape: s32[2,1,16,16], index: 1, kind: input, shape index: {}]
  %s2 = inlined_call_operand.vmem [shape: f32[2,1,4,16], index: 2, kind: output, shape index: {0}]
  %s3 = inlined_call_operand.vmem [shape: f32[2,1,4,16], index: 3, kind: output, shape index: {1}]
  %s4 = inlined_call_operand.vmem [shape: f32[2,1,4,16], index: 4, kind: output, shape index: {2}]
  %s5 = inlined_call_operand.vmem [shape: f32[2,1,4,16], index: 5, kind: output, shape index: {3}]
  %6 = xla_tuple %s2, %s3, %s4, %s5
  %s7 = sld [smem:[#allocation0]]
  $region77: #{loss_fn.1} parent=0
    _
  %s9 = ssub.s32 1, %s7
  %s10 = scalar_select 0, %s9, %s7
  $region1: #{loss_fn.1} parent=0
    #allocation2 [shape = 'u8[65536]{0}', space=vmem, size = 0x10000, scoped, tag = 'input window, operand 0']
    #allocation3 [shape = 's32[2]{0}', space=sflag, size = 0x8, scoped, tag = 'scoped memory for loss_fn.1']
    #allocation4 [shape = 'u8[16384]{0}', space=vmem, size = 0x4000, scoped, tag = 'input window, operand 1']
    #allocation5 [shape = 's32[2]{0}', space=sflag, size = 0x8, scoped, tag = 'scoped memory for loss_fn.1']
    %11 = vsyncpa [#allocation3], 0
    %s12 = scalar_lea.sflag [#allocation3], 1
    %13 = vsyncpa %s12, 0
    %14 = vsyncpa [#allocation5], 0
    %s15 = scalar_lea.sflag [#allocation5], 1
    %16 = vsyncpa %s15, 0
    loop: start=0, step=1, limit=4
    $region2: #{loss_fn.1} parent=1 // loop_pre_header
      _
    $region3: #{loss_fn.1} parent=1 // loop_header
      %s18 = sphi 0, %s22
      %p19 = scmp.ge.s32.totalorder %s18, 4
      %s25 = sphi 0, %s44
      %s26 = sphi 0, %s40
      %s27 = sphi 0, %s36
      %s28 = sphi 0, %s25
      %s29 = sphi 0, %s26
      %s30 = sphi 0, %s27
      %s31 = sphi 0, %s28
      %s32 = sphi 0, %s29
      %s33 = sphi 0, %s30
      %s51 = sphi 0, %s53
      %s54 = sphi 0, %s51
      %s55 = sphi 0, %s54
      %s71 = sphi 0, %s55
      %s81 = sphi 0, %s83
      %s84 = sphi 0, %s81
      %s85 = sphi 0, %s84
      %s101 = sphi 0, %s85
      %s109 = sphi 0, %s111
      %s112 = sphi 0, %s109
      %s113 = sphi 0, %s112
      %s129 = sphi 0, %s113
      %s137 = sphi 0, %s139
      %s140 = sphi 0, %s137
      %s141 = sphi 0, %s140
      %s157 = sphi 0, %s141
      %s165 = sphi 0, %s167
      %s168 = sphi 0, %s165
      %s169 = sphi 0, %s168
      %s185 = sphi 0, %s169
      %s193 = sphi 0, %s195
      %s196 = sphi 0, %s193
      %s197 = sphi 0, %s196
      %s213 = sphi 0, %s197
    $region4: #{loss_fn.1} parent=1 // loop_header_branch
      %21 = sbr.rel (%p19) target = $region8
    $region5: #{loss_fn.1} parent=1 // loop_body
      %s23 = ssub.s32 %s18, 1
      %s24 = ssub.s32 %s18, 2
      %s34 = sadd.s32 1, %s27
      %p35 = scmp.ge.s32.totalorder %s34, 1
      %s36 = scalar_select %p35, 0, %s34
      %s37 = sadd.s32 1, %s26
      %s38 = scalar_select %p35, %s37, %s26
      %p39 = scmp.ge.s32.totalorder %s38, 1
      %s40 = scalar_select %p39, 0, %s38
      %s41 = sadd.s32 1, %s25
      %s42 = scalar_select %p39, %s41, %s25
      %p43 = scmp.ge.s32.totalorder %s42, 2
      %s44 = scalar_select %p43, 0, %s42
      %s45 = sadd.s32 %s26, %s27
      %s46 = sadd.s32 %s40, %s36
      %s47 = ssub.s32 %s25, %s44
      %s48 = ssub.s32 %s45, %s46
      %s49 = sor.u32 %s47, %s48
      %p50 = scmp.eq.s32.totalorder %s49, 0
      %s52 = sadd.s32 %s51, 1
      %s53 = scalar_select %p50, %s51, %s52
      %p56 = pneg %p50
      %p57 = scmp.eq.s32.totalorder %s18, 1
      %p58 = por %p56, %p57
      %p59 = scmp.ne.s32.totalorder %s51, %s54
      %p60 = scmp.eq.s32.totalorder %s18, 0
      %p61 = por %p59, %p60
      %p62 = scmp.ne.s32.totalorder %s51, %s54
      %p63 = scmp.eq.s32.totalorder %s23, 1
      %p64 = por %p62, %p63
      %p65 = scmp.ne.s32.totalorder %s54, %s55
      %p66 = scmp.eq.s32.totalorder %s23, 0
      %p67 = por %p65, %p66
      %p68 = scmp.ne.s32.totalorder %s54, %s55
      %p69 = scmp.eq.s32.totalorder %s24, 1
      %p70 = por %p68, %p69
      %p72 = scmp.ne.s32.totalorder %s55, %s71
      %p73 = scmp.eq.s32.totalorder %s24, 0
      %p74 = por %p72, %p73
      %s75 = sadd.s32 %s26, %s27
      %s76 = sadd.s32 %s40, %s36
      %s77 = ssub.s32 %s25, %s44
      %s78 = ssub.s32 %s75, %s76
      %s79 = sor.u32 %s77, %s78
      %p80 = scmp.eq.s32.totalorder %s79, 0
      %s82 = sadd.s32 %s81, 1
      %s83 = scalar_select %p80, %s81, %s82
      %p86 = pneg %p80
      %p87 = scmp.eq.s32.totalorder %s18, 1
      %p88 = por %p86, %p87
      %p89 = scmp.ne.s32.totalorder %s81, %s84
      %p90 = scmp.eq.s32.totalorder %s18, 0
      %p91 = por %p89, %p90
      %p92 = scmp.ne.s32.totalorder %s81, %s84
      %p93 = scmp.eq.s32.totalorder %s23, 1
      %p94 = por %p92, %p93
      %p95 = scmp.ne.s32.totalorder %s84, %s85
      %p96 = scmp.eq.s32.totalorder %s23, 0
      %p97 = por %p95, %p96
      %p98 = scmp.ne.s32.totalorder %s84, %s85
      %p99 = scmp.eq.s32.totalorder %s24, 1
      %p100 = por %p98, %p99
      %p102 = scmp.ne.s32.totalorder %s85, %s101
      %p103 = scmp.eq.s32.totalorder %s24, 0
      %p104 = por %p102, %p103
      %s105 = ssub.s32 %s25, %s44
      %s106 = ssub.s32 %s26, %s40
      %s107 = sor.u32 %s105, %s106
      %p108 = scmp.eq.s32.totalorder %s107, 0
      %s110 = sadd.s32 %s109, 1
      %s111 = scalar_select %p108, %s109, %s110
      %p114 = pneg %p108
      %p115 = scmp.eq.s32.totalorder %s18, 1
      %p116 = por %p114, %p115
      %p117 = scmp.ne.s32.totalorder %s109, %s112
      %p118 = scmp.eq.s32.totalorder %s18, 0
      %p119 = por %p117, %p118
      %p120 = scmp.ne.s32.totalorder %s109, %s112
      %p121 = scmp.eq.s32.totalorder %s23, 1
      %p122 = por %p120, %p121
      %p123 = scmp.ne.s32.totalorder %s112, %s113
      %p124 = scmp.eq.s32.totalorder %s23, 0
      %p125 = por %p123, %p124
      %p126 = scmp.ne.s32.totalorder %s112, %s113
      %p127 = scmp.eq.s32.totalorder %s24, 1
      %p128 = por %p126, %p127
      %p130 = scmp.ne.s32.totalorder %s113, %s129
      %p131 = scmp.eq.s32.totalorder %s24, 0
      %p132 = por %p130, %p131
      %s133 = ssub.s32 %s25, %s44
      %s134 = ssub.s32 %s26, %s40
      %s135 = sor.u32 %s133, %s134
      %p136 = scmp.eq.s32.totalorder %s135, 0
      %s138 = sadd.s32 %s137, 1
      %s139 = scalar_select %p136, %s137, %s138
      %p142 = pneg %p136
      %p143 = scmp.eq.s32.totalorder %s18, 1
      %p144 = por %p142, %p143
      %p145 = scmp.ne.s32.totalorder %s137, %s140
      %p146 = scmp.eq.s32.totalorder %s18, 0
      %p147 = por %p145, %p146
      %p148 = scmp.ne.s32.totalorder %s137, %s140
      %p149 = scmp.eq.s32.totalorder %s23, 1
      %p150 = por %p148, %p149
      %p151 = scmp.ne.s32.totalorder %s140, %s141
      %p152 = scmp.eq.s32.totalorder %s23, 0
      %p153 = por %p151, %p152
      %p154 = scmp.ne.s32.totalorder %s140, %s141
      %p155 = scmp.eq.s32.totalorder %s24, 1
      %p156 = por %p154, %p155
      %p158 = scmp.ne.s32.totalorder %s141, %s157
      %p159 = scmp.eq.s32.totalorder %s24, 0
      %p160 = por %p158, %p159
      %s161 = ssub.s32 %s25, %s44
      %s162 = ssub.s32 %s26, %s40
      %s163 = sor.u32 %s161, %s162
      %p164 = scmp.eq.s32.totalorder %s163, 0
      %s166 = sadd.s32 %s165, 1
      %s167 = scalar_select %p164, %s165, %s166
      %p170 = pneg %p164
      %p171 = scmp.eq.s32.totalorder %s18, 1
      %p172 = por %p170, %p171
      %p173 = scmp.ne.s32.totalorder %s165, %s168
      %p174 = scmp.eq.s32.totalorder %s18, 0
      %p175 = por %p173, %p174
      %p176 = scmp.ne.s32.totalorder %s165, %s168
      %p177 = scmp.eq.s32.totalorder %s23, 1
      %p178 = por %p176, %p177
      %p179 = scmp.ne.s32.totalorder %s168, %s169
      %p180 = scmp.eq.s32.totalorder %s23, 0
      %p181 = por %p179, %p180
      %p182 = scmp.ne.s32.totalorder %s168, %s169
      %p183 = scmp.eq.s32.totalorder %s24, 1
      %p184 = por %p182, %p183
      %p186 = scmp.ne.s32.totalorder %s169, %s185
      %p187 = scmp.eq.s32.totalorder %s24, 0
      %p188 = por %p186, %p187
      %s189 = ssub.s32 %s25, %s44
      %s190 = ssub.s32 %s26, %s40
      %s191 = sor.u32 %s189, %s190
      %p192 = scmp.eq.s32.totalorder %s191, 0
      %s194 = sadd.s32 %s193, 1
      %s195 = scalar_select %p192, %s193, %s194
      %p198 = pneg %p192
      %p199 = scmp.eq.s32.totalorder %s18, 1
      %p200 = por %p198, %p199
      %p201 = scmp.ne.s32.totalorder %s193, %s196
      %p202 = scmp.eq.s32.totalorder %s18, 0
      %p203 = por %p201, %p202
      %p204 = scmp.ne.s32.totalorder %s193, %s196
      %p205 = scmp.eq.s32.totalorder %s23, 1
      %p206 = por %p204, %p205
      %p207 = scmp.ne.s32.totalorder %s196, %s197
      %p208 = scmp.eq.s32.totalorder %s23, 0
      %p209 = por %p207, %p208
      %p210 = scmp.ne.s32.totalorder %s196, %s197
      %p211 = scmp.eq.s32.totalorder %s24, 1
      %p212 = por %p210, %p211
      %p214 = scmp.ne.s32.totalorder %s197, %s213
      %p215 = scmp.eq.s32.totalorder %s24, 0
      %p216 = por %p214, %p215
      %p217 = scmp.le.s32.totalorder 1, %s18
      %p218 = scmp.lt.s32.totalorder %s18, 3
      %p219 = pnand %p217, %p218
      %p220 = pneg %p219
      // Predicated region
      $region9: #{loss_fn.1} parent=5 // pred_check
        _
      $region10: #{loss_fn.1} parent=5 // pred_check_branch
        %222 = sbr.rel (%p219) target = $region12
      $region11: #{loss_fn.1} parent=5 // pred_region
        %s223 = ssub.s32 %s18, 1
      $region12: #{loss_fn.1} parent=5 // pred_fallthru
        _
      %p224 = scmp.lt.s32.totalorder %s18, 2
      // Predicated region
      $region13: #{loss_fn.1} parent=5 // pred_check
        %p225 = pneg %p224
      $region14: #{loss_fn.1} parent=5 // pred_check_branch
        %227 = sbr.rel (%p225) target = $region16
      $region15: #{loss_fn.1} parent=5 // pred_region
        // Predicated region
        $region17: #{loss_fn.1} parent=15 // pred_check
          %p228 = pneg %p61
        $region18: #{loss_fn.1} parent=15 // pred_check_branch
          %230 = sbr.rel (%p228) target = $region20
        $region19: #{loss_fn.1} parent=15 // pred_region
          %s231 = sand.u32 %s51, 1
          %s232 = scalar_lea.sflag [#allocation3], %s231
          %s233 = sand.u32 %s51, 1
          %s234 = smul.addr %s233, 64
          %s235 = scalar_lea.vmem [#allocation2], %s234
          %s236 = sadd.s32 %s26, %s27
          %s237 = smul.u32 2, %s236
          %s239 = ssub.s32 1024, 1024
          %240 = vsyncadd %s232, %s239
          %s241 = smul.addr %s25, 8
          %s242 = sadd.s32 %s237, %s241
          %s243 = smul.addr %s242, 128
          %s244 = scalar_lea.hbm %s0, %s243
          %s245 = sshll.u32 %s235, 4
          %s246 = int_to_ptr.vmem [resolvable:$true] %s245
          %251 = dma.hbm_to_vmem [thread:$0]  %s244, 1024, %s246, %s232, 128, 128, 8
        $region20: #{loss_fn.1} parent=15 // pred_fallthru
          _
        // Predicated region
        $region21: #{loss_fn.1} parent=15 // pred_check
          %p252 = pneg %p91
        $region22: #{loss_fn.1} parent=15 // pred_check_branch
          %254 = sbr.rel (%p252) target = $region24
        $region23: #{loss_fn.1} parent=15 // pred_region
          %s255 = sand.u32 %s81, 1
          %s256 = scalar_lea.sflag [#allocation5], %s255
          %s257 = sand.u32 %s81, 1
          %s258 = smul.addr %s257, 16
          %s259 = scalar_lea.vmem [#allocation4], %s258
          %s260 = sadd.s32 %s26, %s27
          %s261 = smul.u32 2, %s260
          %s263 = ssub.s32 256, 256
          %264 = vsyncadd %s256, %s263
          %s265 = smul.addr %s25, 2
          %s266 = sadd.s32 %s261, %s265
          %s267 = smul.addr %s266, 128
          %s268 = scalar_lea.hbm %s1, %s267
          %s269 = sshll.u32 %s259, 4
          %s270 = int_to_ptr.vmem [resolvable:$true] %s269
          %275 = dma.hbm_to_vmem [thread:$0]  %s268, 256, %s270, %s256, 128, 128, 8
        $region24: #{loss_fn.1} parent=15 // pred_fallthru
          _
      $region16: #{loss_fn.1} parent=5 // pred_fallthru
        _
      %p276 = scmp.le.s32.totalorder 1, %s18
      %p277 = scmp.lt.s32.totalorder %s18, 3
      %p278 = pnand %p276, %p277
      %p279 = pneg %p278
      // Predicated region
      $region25: #{loss_fn.1} parent=5 // pred_check
        _
      $region26: #{loss_fn.1} parent=5 // pred_check_branch
        %281 = sbr.rel (%p278) target = $region28
      $region27: #{loss_fn.1} parent=5 // pred_region
        %s282 = ssub.s32 %s18, 1
        %s283 = sand.u32 %s54, 1
        %s284 = scalar_lea.sflag [#allocation3], %s283
        %s285 = sand.u32 %s54, 1
        %s286 = smul.addr %s285, 64
        %s287 = scalar_lea.vmem [#allocation2], %s286
        // Predicated region
        $region29: #{loss_fn.1} parent=27 // pred_check
          %p288 = pneg %p67
        $region30: #{loss_fn.1} parent=27 // pred_check_branch
          %290 = sbr.rel (%p288) target = $region32
        $region31: #{loss_fn.1} parent=27 // pred_region
          %291 = dma.done %s284, 1024
        $region32: #{loss_fn.1} parent=27 // pred_fallthru
          _
        %s292 = sand.u32 %s84, 1
        %s293 = scalar_lea.sflag [#allocation5], %s292
        %s294 = sand.u32 %s84, 1
        %s295 = smul.addr %s294, 16
        %s296 = scalar_lea.vmem [#allocation4], %s295
        // Predicated region
        $region33: #{loss_fn.1} parent=27 // pred_check
          %p297 = pneg %p97
        $region34: #{loss_fn.1} parent=27 // pred_check_branch
          %299 = sbr.rel (%p297) target = $region36
        $region35: #{loss_fn.1} parent=27 // pred_region
          %300 = dma.done %s293, 256
        $region36: #{loss_fn.1} parent=27 // pred_fallthru
          _
        %s301 = sand.u32 %s54, 1
        %s302 = scalar_lea.sflag [#allocation3], %s301
        %s303 = sand.u32 %s54, 1
        %s304 = smul.addr %s303, 64
        %s305 = scalar_lea.vmem [#allocation2], %s304
        %p306 = pneg %p67
        %p307 = pneg %p64
        %s308 = sand.u32 %s84, 1
        %s309 = scalar_lea.sflag [#allocation5], %s308
        %s310 = sand.u32 %s84, 1
        %s311 = smul.addr %s310, 16
        %s312 = scalar_lea.vmem [#allocation4], %s311
        %p313 = pneg %p97
        %p314 = pneg %p94
        %p315 = pneg %p125
        %p316 = pneg %p122
        %p317 = scmp.lt.s32.totalorder %s28, 1
        %s318 = scalar_select %p317, %s28, 1
        %p319 = scmp.lt.s32.totalorder %s29, 0
        %s320 = scalar_select %p319, %s29, 0
        %s321 = sadd.s32 %s320, %s318
        %s322 = smul.addr %s321, 4
        %s323 = scalar_lea.vmem %s2, %s322
        %p324 = pneg %p153
        %p325 = pneg %p150
        %p326 = scmp.lt.s32.totalorder %s28, 1
        %s327 = scalar_select %p326, %s28, 1
        %p328 = scmp.lt.s32.totalorder %s29, 0
        %s329 = scalar_select %p328, %s29, 0
        %s330 = sadd.s32 %s329, %s327
        %s331 = smul.addr %s330, 4
        %s332 = scalar_lea.vmem %s3, %s331
        %p333 = pneg %p181
        %p334 = pneg %p178
        %p335 = scmp.lt.s32.totalorder %s28, 1
        %s336 = scalar_select %p335, %s28, 1
        %p337 = scmp.lt.s32.totalorder %s29, 0
        %s338 = scalar_select %p337, %s29, 0
        %s339 = sadd.s32 %s338, %s336
        %s340 = smul.addr %s339, 4
        %s341 = scalar_lea.vmem %s4, %s340
        %p342 = pneg %p209
        %p343 = pneg %p206
        %p344 = scmp.lt.s32.totalorder %s28, 1
        %s345 = scalar_select %p344, %s28, 1
        %p346 = scmp.lt.s32.totalorder %s29, 0
        %s347 = scalar_select %p346, %s29, 0
        %s348 = sadd.s32 %s347, %s345
        %s349 = smul.addr %s348, 4
        %s350 = scalar_lea.vmem %s5, %s349
        %s351 = sadd.s32 %s29, %s30
        %s352 = smul.u32 2, %s351
        %s353 = sadd.s32 %s29, %s30
        %s354 = smul.u32 2, %s353
        %p355 = scmp.lt.s32.totalorder %s28, 1
        %s356 = scalar_select %p355, %s28, 1
        %p357 = scmp.lt.s32.totalorder %s29, 0
        %s358 = scalar_select %p357, %s29, 0
        %s359 = sadd.s32 %s358, %s356
        %s360 = smul.addr %s359, 4
        %s361 = scalar_lea.vmem %s2, %s360
        %p362 = scmp.lt.s32.totalorder %s28, 1
        %s363 = scalar_select %p362, %s28, 1
        %p364 = scmp.lt.s32.totalorder %s29, 0
        %s365 = scalar_select %p364, %s29, 0
        %s366 = sadd.s32 %s365, %s363
        %s367 = smul.addr %s366, 4
        %s368 = scalar_lea.vmem %s3, %s367
        %p369 = scmp.lt.s32.totalorder %s28, 1
        %s370 = scalar_select %p369, %s28, 1
        %p371 = scmp.lt.s32.totalorder %s29, 0
        %s372 = scalar_select %p371, %s29, 0
        %s373 = sadd.s32 %s372, %s370
        %s374 = smul.addr %s373, 4
        %s375 = scalar_lea.vmem %s4, %s374
        %p376 = scmp.lt.s32.totalorder %s28, 1
        %s377 = scalar_select %p376, %s28, 1
        %p378 = scmp.lt.s32.totalorder %s29, 0
        %s379 = scalar_select %p378, %s29, 0
        %s380 = sadd.s32 %s379, %s377
        %s381 = smul.addr %s380, 4
        %s382 = scalar_lea.vmem %s5, %s381
        %p383 = scmp.eq.s32.totalorder %s30, 0
        // Predicated region
        $region37: #{loss_fn.1} parent=27 // pred_check
          %p384 = pneg %p383
        $region38: #{loss_fn.1} parent=27 // pred_check_branch
          %386 = sbr.rel (%p384) target = $region40
        $region39: #{loss_fn.1} parent=27 // pred_region
          %vm387 = vcmask 125952
          %388 = vst.msk [vmem:[%s361] sm:$0xf] %vm387, 0.0
          %389 = vst.msk [vmem:[%s368] sm:$0xf] %vm387, 0.0
          %390 = vst.msk [vmem:[%s375] sm:$0xf] %vm387, 0.0
          %391 = vst.msk [vmem:[%s382] sm:$0xf] %vm387, 0.0
        $region40: #{loss_fn.1} parent=27 // pred_fallthru
          _
        %v392 = vld [vmem:[%s287] sm:$0xff]
        %v393 = vld [vmem:[%s287 + $0x8] sm:$0xff]
        %v394 = vld [vmem:[%s287 + $0x10] sm:$0xff]
        %v395 = vld [vmem:[%s287 + $0x18] sm:$0xff]
        %v396 = vld [vmem:[%s287 + $0x20] sm:$0xff]
        %v397 = vld [vmem:[%s287 + $0x28] sm:$0xff]
        %v398 = vld [vmem:[%s287 + $0x30] sm:$0xff]
        %v399 = vld [vmem:[%s287 + $0x38] sm:$0xff]
        %v400 = vld [vmem:[%s296] sm:$0xff]
        %v401 = vld [vmem:[%s296 + $0x8] sm:$0xff]
        %vm402 = vcmask 130048
        %v403 = vsel %vm402, %v392, -inf
        %v404 = vsel %vm402, %v394, -inf
        %v405 = vsel %vm402, %v396, -inf
        %v406 = vmax.f32 %v403, %v405
        %v407 = vsel %vm402, %v398, -inf
        %v408 = vmax.f32 %v404, %v407
        %v409 = vmax.f32 %v406, %v408
        %v410 = vsel %vm402, %v393, -inf
        %v411 = vsel %vm402, %v395, -inf
        %v412 = vsel %vm402, %v397, -inf
        %v413 = vmax.f32 %v410, %v412
        %v414 = vsel %vm402, %v399, -inf
        %v415 = vmax.f32 %v411, %v414
        %v416 = vmax.f32 %v413, %v415
        %v417 = vsub.f32 %v392, %v409
        %v418 = vsub.f32 %v393, %v416
        %v419 = vsub.f32 %v394, %v409
        %v420 = vsub.f32 %v395, %v416
        %v421 = vsub.f32 %v396, %v409
        %v422 = vsub.f32 %v397, %v416
        %v423 = vsub.f32 %v398, %v409
        %v424 = vsub.f32 %v399, %v416
        %v425 = vmul.f32 %v417, 1.442695
        %v426 = vpow.pop %v425
        %v427 = vmul.f32 %v418, 1.442695
        %v428 = vpow.pop %v427
        %v429 = vmul.f32 %v419, 1.442695
        %v430 = vpow.pop %v429
        %v431 = vmul.f32 %v420, 1.442695
        %v432 = vpow.pop %v431
        %v433 = vmul.f32 %v421, 1.442695
        %v434 = vpow.pop %v433
        %v435 = vmul.f32 %v422, 1.442695
        %v436 = vpow.pop %v435
        %v437 = vmul.f32 %v423, 1.442695
        %v438 = vpow.pop %v437
        %v439 = vmul.f32 %v424, 1.442695
        %v440 = vpow.pop %v439
        %v441 = vsel %vm402, %v426, 0.0
        %v442 = vsel %vm402, %v430, 0.0
        %v443 = vadd.f32 %v441, %v442
        %v444 = vsel %vm402, %v434, 0.0
        %v445 = vadd.f32 %v443, %v444
        %v446 = vsel %vm402, %v438, 0.0
        %v447 = vadd.f32 %v445, %v446
        %v448 = vsel %vm402, %v428, 0.0
        %v449 = vsel %vm402, %v432, 0.0
        %v450 = vadd.f32 %v448, %v449
        %v451 = vsel %vm402, %v436, 0.0
        %v452 = vadd.f32 %v450, %v451
        %v453 = vsel %vm402, %v440, 0.0
        %v454 = vadd.f32 %v452, %v453
        %v455 = vrcp.pop %v447
        %v456 = vrcp.pop %v454
        %v457 = vmul.f32 %v447, %v455
        %v458 = vmul.f32 %v454, %v456
        %v459 = vsub.f32 2.0, %v457
        %v460 = vsub.f32 2.0, %v458
        %v461 = vmul.f32 %v455, %v459
        %v462 = vmul.f32 %v456, %v460
        %v463 = vmul.f32 %v426, %v461
        %v464 = vmul.f32 %v428, %v462
        %v465 = vmul.f32 %v430, %v461
        %v466 = vmul.f32 %v432, %v462
        %v467 = vmul.f32 %v434, %v461
        %v468 = vmul.f32 %v436, %v462
        %v469 = vmul.f32 %v438, %v461
        %v470 = vmul.f32 %v440, %v462
        %v471 = vlog2.pop %v447
        %v472 = vmul.f32 %v471, 0.6931472
        %v473 = vlog2.pop %v454
        %v474 = vmul.f32 %v473, 0.6931472
        %v475 = vadd.f32 %v409, %v472
        %v476 = vadd.f32 %v416, %v474
        %vm477 = vcmp.eq.s32.totalorder %v400, 0
        %vm478 = vcmp.eq.s32.totalorder %v401, 0
        %vm479 = vcmp.eq.s32.totalorder %v400, 1
        %vm480 = vcmp.eq.s32.totalorder %v401, 1
        %vm481 = vcmp.eq.s32.totalorder %v400, 2
        %vm482 = vcmp.eq.s32.totalorder %v401, 2
        %vm483 = vcmp.eq.s32.totalorder %v400, 3
        %vm484 = vcmp.eq.s32.totalorder %v401, 3
        %v485 = vld [vmem:[%s361] sm:$0xf]
        %v486 = vsub.f32 %v475, %v392
        %v487 = vsub.f32 %v476, %v393
        %v488 = vsub.f32 %v475, %v394
        %v489 = vsub.f32 %v476, %v395
        %v490 = vsub.f32 %v475, %v396
        %v491 = vsub.f32 %v476, %v397
        %v492 = vsub.f32 %v475, %v398
        %v493 = vsub.f32 %v476, %v399
        %v494 = vsel %vm477, %v486, 0.0
        %v495 = vsel %vm478, %v487, 0.0
        %v496 = vsel %vm479, %v488, 0.0
        %v497 = vsel %vm480, %v489, 0.0
        %v498 = vsel %vm481, %v490, 0.0
        %v499 = vsel %vm482, %v491, 0.0
        %v500 = vsel %vm483, %v492, 0.0
        %v501 = vsel %vm484, %v493, 0.0
        %v502 = vsel %vm402, %v494, 0.0
        %v503 = vsel %vm402, %v495, 0.0
        %v504 = vadd.f32 %v502, %v503
        %v505 = vrot.slane %v504, 4
        %v506 = vadd.f32 %v504, %v505
        %v507 = vrot.slane %v506, 2
        %v508 = vadd.f32 %v506, %v507
        %v509 = vrot.slane %v508, 1
        %v510 = vadd.f32 %v508, %v509
        %v511 = vsel %vm402, %v496, 0.0
        %v512 = vsel %vm402, %v497, 0.0
        %v513 = vadd.f32 %v511, %v512
        %v514 = vrot.slane %v513, 4
        %v515 = vadd.f32 %v513, %v514
        %v516 = vrot.slane %v515, 2
        %v517 = vadd.f32 %v515, %v516
        %v518 = vrot.slane %v517, 1
        %v519 = vadd.f32 %v517, %v518
        %v520 = vsel %vm402, %v498, 0.0
        %v521 = vsel %vm402, %v499, 0.0
        %v522 = vadd.f32 %v520, %v521
        %v523 = vrot.slane %v522, 4
        %v524 = vadd.f32 %v522, %v523
        %v525 = vrot.slane %v524, 2
        %v526 = vadd.f32 %v524, %v525
        %v527 = vrot.slane %v526, 1
        %v528 = vadd.f32 %v526, %v527
        %v529 = vsel %vm402, %v500, 0.0
        %v530 = vsel %vm402, %v501, 0.0
        %v531 = vadd.f32 %v529, %v530
        %v532 = vrot.slane %v531, 4
        %v533 = vadd.f32 %v531, %v532
        %v534 = vrot.slane %v533, 2
        %v535 = vadd.f32 %v533, %v534
        %v536 = vrot.slane %v535, 1
        %v537 = vadd.f32 %v535, %v536
        %vm542 = vcmask 1041409
        %v543 = vsel %vm542, %v519, %v510
        %vm544 = vcmask 1042434
        %v545 = vsel %vm544, %v528, %v543
        %vm546 = vcmask 1043459
        %v547 = vsel %vm546, %v537, %v545
        %v549 = vadd.f32 %v485, %v547
        %vm550 = vcmask 125952
        %551 = vst.msk [vmem:[%s361] sm:$0xf] %vm550, %v549
        %v552 = vld [vmem:[%s368] sm:$0xf]
        %v553 = vsel %vm477, 1.0, 0.0
        %v554 = vsel %vm478, 1.0, 0.0
        %v555 = vsel %vm479, 1.0, 0.0
        %v556 = vsel %vm480, 1.0, 0.0
        %v557 = vsel %vm481, 1.0, 0.0
        %v558 = vsel %vm482, 1.0, 0.0
        %v559 = vsel %vm483, 1.0, 0.0
        %v560 = vsel %vm484, 1.0, 0.0
        %v561 = vsel %vm402, %v553, 0.0
        %v562 = vsel %vm402, %v554, 0.0
        %v563 = vadd.f32 %v561, %v562
        %v564 = vrot.slane %v563, 4
        %v565 = vadd.f32 %v563, %v564
        %v566 = vrot.slane %v565, 2
        %v567 = vadd.f32 %v565, %v566
        %v568 = vrot.slane %v567, 1
        %v569 = vadd.f32 %v567, %v568
        %v570 = vsel %vm402, %v555, 0.0
        %v571 = vsel %vm402, %v556, 0.0
        %v572 = vadd.f32 %v570, %v571
        %v573 = vrot.slane %v572, 4
        %v574 = vadd.f32 %v572, %v573
        %v575 = vrot.slane %v574, 2
        %v576 = vadd.f32 %v574, %v575
        %v577 = vrot.slane %v576, 1
        %v578 = vadd.f32 %v576, %v577
        %v579 = vsel %vm402, %v557, 0.0
        %v580 = vsel %vm402, %v558, 0.0
        %v581 = vadd.f32 %v579, %v580
        %v582 = vrot.slane %v581, 4
        %v583 = vadd.f32 %v581, %v582
        %v584 = vrot.slane %v583, 2
        %v585 = vadd.f32 %v583, %v584
        %v586 = vrot.slane %v585, 1
        %v587 = vadd.f32 %v585, %v586
        %v588 = vsel %vm402, %v559, 0.0
        %v589 = vsel %vm402, %v560, 0.0
        %v590 = vadd.f32 %v588, %v589
        %v591 = vrot.slane %v590, 4
        %v592 = vadd.f32 %v590, %v591
        %v593 = vrot.slane %v592, 2
        %v594 = vadd.f32 %v592, %v593
        %v595 = vrot.slane %v594, 1
        %v596 = vadd.f32 %v594, %v595
        %v601 = vsel %vm542, %v578, %v569
        %v602 = vsel %vm544, %v587, %v601
        %v603 = vsel %vm546, %v596, %v602
        %v605 = vadd.f32 %v552, %v603
        %606 = vst.msk [vmem:[%s368] sm:$0xf] %vm550, %v605
        %v607 = vld [vmem:[%s375] sm:$0xf]
        %v608 = vsel %vm477, %v463, 0.0
        %v609 = vsel %vm478, %v464, 0.0
        %v610 = vsel %vm479, %v465, 0.0
        %v611 = vsel %vm480, %v466, 0.0
        %v612 = vsel %vm481, %v467, 0.0
        %v613 = vsel %vm482, %v468, 0.0
        %v614 = vsel %vm483, %v469, 0.0
        %v615 = vsel %vm484, %v470, 0.0
        %v616 = vsel %vm402, %v608, 0.0
        %v617 = vsel %vm402, %v609, 0.0
        %v618 = vadd.f32 %v616, %v617
        %v619 = vrot.slane %v618, 4
        %v620 = vadd.f32 %v618, %v619
        %v621 = vrot.slane %v620, 2
        %v622 = vadd.f32 %v620, %v621
        %v623 = vrot.slane %v622, 1
        %v624 = vadd.f32 %v622, %v623
        %v625 = vsel %vm402, %v610, 0.0
        %v626 = vsel %vm402, %v611, 0.0
        %v627 = vadd.f32 %v625, %v626
        %v628 = vrot.slane %v627, 4
        %v629 = vadd.f32 %v627, %v628
        %v630 = vrot.slane %v629, 2
        %v631 = vadd.f32 %v629, %v630
        %v632 = vrot.slane %v631, 1
        %v633 = vadd.f32 %v631, %v632
        %v634 = vsel %vm402, %v612, 0.0
        %v635 = vsel %vm402, %v613, 0.0
        %v636 = vadd.f32 %v634, %v635
        %v637 = vrot.slane %v636, 4
        %v638 = vadd.f32 %v636, %v637
        %v639 = vrot.slane %v638, 2
        %v640 = vadd.f32 %v638, %v639
        %v641 = vrot.slane %v640, 1
        %v642 = vadd.f32 %v640, %v641
        %v643 = vsel %vm402, %v614, 0.0
        %v644 = vsel %vm402, %v615, 0.0
        %v645 = vadd.f32 %v643, %v644
        %v646 = vrot.slane %v645, 4
        %v647 = vadd.f32 %v645, %v646
        %v648 = vrot.slane %v647, 2
        %v649 = vadd.f32 %v647, %v648
        %v650 = vrot.slane %v649, 1
        %v651 = vadd.f32 %v649, %v650
        %v656 = vsel %vm542, %v633, %v624
        %v657 = vsel %vm544, %v642, %v656
        %v658 = vsel %vm546, %v651, %v657
        %v660 = vadd.f32 %v607, %v658
        %661 = vst.msk [vmem:[%s375] sm:$0xf] %vm550, %v660
        %v662 = vld [vmem:[%s382] sm:$0xf]
        %v663 = vsel %vm402, %v463, 0.0
        %v664 = vsel %vm402, %v464, 0.0
        %v665 = vadd.f32 %v663, %v664
        %v666 = vrot.slane %v665, 4
        %v667 = vadd.f32 %v665, %v666
        %v668 = vrot.slane %v667, 2
        %v669 = vadd.f32 %v667, %v668
        %v670 = vrot.slane %v669, 1
        %v671 = vadd.f32 %v669, %v670
        %v672 = vsel %vm402, %v465, 0.0
        %v673 = vsel %vm402, %v466, 0.0
        %v674 = vadd.f32 %v672, %v673
        %v675 = vrot.slane %v674, 4
        %v676 = vadd.f32 %v674, %v675
        %v677 = vrot.slane %v676, 2
        %v678 = vadd.f32 %v676, %v677
        %v679 = vrot.slane %v678, 1
        %v680 = vadd.f32 %v678, %v679
        %v681 = vsel %vm402, %v467, 0.0
        %v682 = vsel %vm402, %v468, 0.0
        %v683 = vadd.f32 %v681, %v682
        %v684 = vrot.slane %v683, 4
        %v685 = vadd.f32 %v683, %v684
        %v686 = vrot.slane %v685, 2
        %v687 = vadd.f32 %v685, %v686
        %v688 = vrot.slane %v687, 1
        %v689 = vadd.f32 %v687, %v688
        %v690 = vsel %vm402, %v469, 0.0
        %v691 = vsel %vm402, %v470, 0.0
        %v692 = vadd.f32 %v690, %v691
        %v693 = vrot.slane %v692, 4
        %v694 = vadd.f32 %v692, %v693
        %v695 = vrot.slane %v694, 2
        %v696 = vadd.f32 %v694, %v695
        %v697 = vrot.slane %v696, 1
        %v698 = vadd.f32 %v696, %v697
        %v703 = vsel %vm542, %v680, %v671
        %v704 = vsel %vm544, %v689, %v703
        %v705 = vsel %vm546, %v698, %v704
        %v707 = vadd.f32 %v662, %v705
        %708 = vst.msk [vmem:[%s382] sm:$0xf] %vm550, %v707
        %p709 = scmp.lt.s32.totalorder %s28, 1
        %s710 = scalar_select %p709, %s28, 1
        %p711 = scmp.lt.s32.totalorder %s29, 0
        %s712 = scalar_select %p711, %s29, 0
        %s713 = sadd.s32 %s712, %s710
        %s714 = smul.addr %s713, 4
        %s715 = scalar_lea.vmem %s2, %s714
        %p716 = scmp.lt.s32.totalorder %s28, 1
        %s717 = scalar_select %p716, %s28, 1
        %p718 = scmp.lt.s32.totalorder %s29, 0
        %s719 = scalar_select %p718, %s29, 0
        %s720 = sadd.s32 %s719, %s717
        %s721 = smul.addr %s720, 4
        %s722 = scalar_lea.vmem %s3, %s721
        %p723 = scmp.lt.s32.totalorder %s28, 1
        %s724 = scalar_select %p723, %s28, 1
        %p725 = scmp.lt.s32.totalorder %s29, 0
        %s726 = scalar_select %p725, %s29, 0
        %s727 = sadd.s32 %s726, %s724
        %s728 = smul.addr %s727, 4
        %s729 = scalar_lea.vmem %s4, %s728
        %p730 = scmp.lt.s32.totalorder %s28, 1
        %s731 = scalar_select %p730, %s28, 1
        %p732 = scmp.lt.s32.totalorder %s29, 0
        %s733 = scalar_select %p732, %s29, 0
        %s734 = sadd.s32 %s733, %s731
        %s735 = smul.addr %s734, 4
        %s736 = scalar_lea.vmem %s5, %s735
        // Predicated region
        $region41: #{loss_fn.1} parent=27 // pred_check
          %p737 = pneg %p122
        $region42: #{loss_fn.1} parent=27 // pred_check_branch
          %739 = sbr.rel (%p737) target = $region44
        $region43: #{loss_fn.1} parent=27 // pred_region
          _
        $region44: #{loss_fn.1} parent=27 // pred_fallthru
          _
        // Predicated region
        $region45: #{loss_fn.1} parent=27 // pred_check
          %p740 = pneg %p150
        $region46: #{loss_fn.1} parent=27 // pred_check_branch
          %742 = sbr.rel (%p740) target = $region48
        $region47: #{loss_fn.1} parent=27 // pred_region
          _
        $region48: #{loss_fn.1} parent=27 // pred_fallthru
          _
        // Predicated region
        $region49: #{loss_fn.1} parent=27 // pred_check
          %p743 = pneg %p178
        $region50: #{loss_fn.1} parent=27 // pred_check_branch
          %745 = sbr.rel (%p743) target = $region52
        $region51: #{loss_fn.1} parent=27 // pred_region
          _
        $region52: #{loss_fn.1} parent=27 // pred_fallthru
          _
        // Predicated region
        $region53: #{loss_fn.1} parent=27 // pred_check
          %p746 = pneg %p206
        $region54: #{loss_fn.1} parent=27 // pred_check_branch
          %748 = sbr.rel (%p746) target = $region56
        $region55: #{loss_fn.1} parent=27 // pred_region
          _
        $region56: #{loss_fn.1} parent=27 // pred_fallthru
          _
      $region28: #{loss_fn.1} parent=5 // pred_fallthru
        _
      %p749 = scmp.le.s32.totalorder 2, %s18
      // Predicated region
      $region57: #{loss_fn.1} parent=5 // pred_check
        %p750 = pneg %p749
      $region58: #{loss_fn.1} parent=5 // pred_check_branch
        %752 = sbr.rel (%p750) target = $region60
      $region59: #{loss_fn.1} parent=5 // pred_region
        %s753 = ssub.s32 %s18, 2
        // Predicated region
        $region61: #{loss_fn.1} parent=59 // pred_check
          %p754 = pneg %p128
        $region62: #{loss_fn.1} parent=59 // pred_check_branch
          %756 = sbr.rel (%p754) target = $region64
        $region63: #{loss_fn.1} parent=59 // pred_region
          %p757 = scmp.lt.s32.totalorder %s31, 1
          %s758 = scalar_select %p757, %s31, 1
          %p759 = scmp.lt.s32.totalorder %s32, 0
          %s760 = scalar_select %p759, %s32, 0
          %s761 = sadd.s32 %s760, %s758
          %s762 = smul.addr %s761, 4
          %s763 = scalar_lea.vmem %s2, %s762
        $region64: #{loss_fn.1} parent=59 // pred_fallthru
          _
        // Predicated region
        $region65: #{loss_fn.1} parent=59 // pred_check
          %p764 = pneg %p156
        $region66: #{loss_fn.1} parent=59 // pred_check_branch
          %766 = sbr.rel (%p764) target = $region68
        $region67: #{loss_fn.1} parent=59 // pred_region
          %p767 = scmp.lt.s32.totalorder %s31, 1
          %s768 = scalar_select %p767, %s31, 1
          %p769 = scmp.lt.s32.totalorder %s32, 0
          %s770 = scalar_select %p769, %s32, 0
          %s771 = sadd.s32 %s770, %s768
          %s772 = smul.addr %s771, 4
          %s773 = scalar_lea.vmem %s3, %s772
        $region68: #{loss_fn.1} parent=59 // pred_fallthru
          _
        // Predicated region
        $region69: #{loss_fn.1} parent=59 // pred_check
          %p774 = pneg %p184
        $region70: #{loss_fn.1} parent=59 // pred_check_branch
          %776 = sbr.rel (%p774) target = $region72
        $region71: #{loss_fn.1} parent=59 // pred_region
          %p777 = scmp.lt.s32.totalorder %s31, 1
          %s778 = scalar_select %p777, %s31, 1
          %p779 = scmp.lt.s32.totalorder %s32, 0
          %s780 = scalar_select %p779, %s32, 0
          %s781 = sadd.s32 %s780, %s778
          %s782 = smul.addr %s781, 4
          %s783 = scalar_lea.vmem %s4, %s782
        $region72: #{loss_fn.1} parent=59 // pred_fallthru
          _
        // Predicated region
        $region73: #{loss_fn.1} parent=59 // pred_check
          %p784 = pneg %p212
        $region74: #{loss_fn.1} parent=59 // pred_check_branch
          %786 = sbr.rel (%p784) target = $region76
        $region75: #{loss_fn.1} parent=59 // pred_region
          %p787 = scmp.lt.s32.totalorder %s31, 1
          %s788 = scalar_select %p787, %s31, 1
          %p789 = scmp.lt.s32.totalorder %s32, 0
          %s790 = scalar_select %p789, %s32, 0
          %s791 = sadd.s32 %s790, %s788
          %s792 = smul.addr %s791, 4
          %s793 = scalar_lea.vmem %s5, %s792
        $region76: #{loss_fn.1} parent=59 // pred_fallthru
          _
      $region60: #{loss_fn.1} parent=5 // pred_fallthru
        _
    $region6: #{loss_fn.1} parent=1 // loop_footer
      %s22 = sadd.s32 1, %s18
    $region7: #{loss_fn.1} parent=1 // loop_footer_branch
      %17 = sbr.rel target = $region3
    $region8: #{loss_fn.1} parent=1 // loop_exit
      _
    %794 = vsyncpa [#allocation3], 1
    %s795 = scalar_lea.sflag [#allocation3], 1
    %796 = vsyncpa %s795, 1
    %797 = vsyncpa [#allocation5], 1
    %s798 = scalar_lea.sflag [#allocation5], 1
    %799 = vsyncpa %s798, 1

</llo_original>
